<compile_context>
chip_gen: v7x
topology: tpu7x:2x2x1
jax: 0.10.0
libtpu: 0.0.40
codegen_flags: <defaults>
</compile_context>

<pallas_src>
import jax
import jax.numpy as jnp
from jax.experimental import pallas as pl
from jax.experimental.pallas import tpu as pltpu


def _dendro_logreg_kernel(idx_ref, x_ref, delta_ref, path_ref, o_ref):
    # idx:(bB,1) i32  x:(bB,F)  delta_aug:(F,E+1)  path_aug:(E+1,N)  o:(1,bB)
    x = x_ref[...]                                                    # (bB, F)

    # MXU matmul chain; root contribution is already folded into delta_aug /
    # path_aug, so xdp[b, n] = x[b]·root + x[b]·(delta @ path[:, n]).
    xd = jnp.dot(x, delta_ref[...],
                 preferred_element_type=jnp.float32)                  # (bB, E+1)
    xdp = jnp.dot(xd.astype(path_ref.dtype), path_ref[...],
                  preferred_element_type=jnp.float32)                 # (bB, N)

    # In-kernel gather of the per-sample tree column via a one-hot select
    # (cheap: N lanes, reduce goes to the XLU slot).
    idx = idx_ref[...]                                                # (bB, 1)
    sel = jax.lax.broadcasted_iota(jnp.int32, xdp.shape, 1) == idx    # (bB, N)
    s = jnp.sum(jnp.where(sel, xdp, 0.0), axis=1)                     # (bB,)

    # Lane-dense store: one (1, block_b) row tile per grid step.
    o_ref[...] = jax.nn.sigmoid(s)[None, :]


def dendro_logreg_forward(x, node_idx, root_weights, delta_mat, path_mat,
                          *, block_b=512, matmul_dtype=jnp.float32):
    """x: (B, F), node_idx: (B,) int, root_weights: (F,),
       delta_mat: (F, E), path_mat: (E, N).
       Returns (B,) f32 = sigmoid(sum(x * effective_weights, axis=1))."""
    B, F = x.shape
    Fd, E = delta_mat.shape
    Ed, N = path_mat.shape
    assert Fd == F and Ed == E

    # Fold root weights into the matmul chain (see header comment).
    delta_aug = jnp.concatenate(
        [delta_mat.astype(jnp.float32),
         root_weights.reshape(F, 1).astype(jnp.float32)],
        axis=1).astype(matmul_dtype)                      # (F, E+1)
    path_aug = jnp.concatenate(
        [path_mat.astype(jnp.float32),
         jnp.ones((1, N), jnp.float32)],
        axis=0).astype(matmul_dtype)                      # (E+1, N)

    # Cast x in the wrapper so the streamed HBM traffic is already in the
    # matmul dtype (halves x bandwidth when matmul_dtype=bf16 on v6e/v7x).
    x = x.astype(matmul_dtype)
    node_idx = node_idx.astype(jnp.int32)

    # Pad the batch up to a multiple of the tile; padded rows are discarded.
    num_blocks = pl.cdiv(B, block_b)
    b_pad = num_blocks * block_b
    if b_pad != B:
        x = jnp.pad(x, ((0, b_pad - B), (0, 0)))
        node_idx = jnp.pad(node_idx, (0, b_pad - B))
    idx2d = node_idx.reshape(b_pad, 1)

    out = pl.pallas_call(
        _dendro_logreg_kernel,
        out_shape=jax.ShapeDtypeStruct((1, b_pad), jnp.float32),
        grid_spec=pltpu.PrefetchScalarGridSpec(
            num_scalar_prefetch=0,
            grid=(num_blocks,),
            in_specs=[
                pl.BlockSpec((block_b, 1), lambda i: (i, 0)),     # node_idx
                pl.BlockSpec((block_b, F), lambda i: (i, 0)),     # x (streamed)
                pl.BlockSpec((F, E + 1), lambda i: (0, 0)),       # delta_aug (resident)
                pl.BlockSpec((E + 1, N), lambda i: (0, 0)),       # path_aug  (resident)
            ],
            out_specs=pl.BlockSpec((1, block_b), lambda i: (0, i)),
        ),
        compiler_params=pltpu.CompilerParams(
            dimension_semantics=("parallel",),
        ),
    )(idx2d, x, delta_aug, path_aug)
    return out.reshape(b_pad)[:B]


def _reference(x, node_idx, root_weights, delta_mat, path_mat):
    eff = root_weights[None, :] + (delta_mat @ path_mat[:, node_idx]).T
    return jax.nn.sigmoid(jnp.sum(x * eff, axis=1))


if __name__ == "__main__":
    # Small deterministic shapes consistent with the module.
    B = 200      # batch (not a tile multiple -> exercises padding)
    F = 64       # num features (root_weights size / rows of delta_mat)
    E = 16       # num tree edges (cols of delta_mat / rows of path_mat)
    N = 12       # num tree nodes (cols of path_mat)

    key = jax.random.PRNGKey(0)
    k1, k2, k3, k4, k5 = jax.random.split(key, 5)

    # Parameter init mirroring __init__ (init_root=True, init_deltas=False):
    root_weights = 0.01 * jax.random.normal(k1, (F,), dtype=jnp.float32)
    delta_mat = 0.1 * jax.random.normal(k2, (F, E), dtype=jnp.float32)
    path_mat = jax.random.bernoulli(k3, 0.5, (E, N)).astype(jnp.float32)

    x = jax.random.normal(k4, (B, F), dtype=jnp.float32)
    node_idx = jax.random.randint(k5, (B,), 0, N, dtype=jnp.int32)

    out = dendro_logreg_forward(x, node_idx, root_weights, delta_mat, path_mat,
                                block_b=128)
    out = jax.block_until_ready(out)

    ref = _reference(x, node_idx, root_weights, delta_mat, path_mat)
    assert out.shape == (B,)
    assert jnp.allclose(out, ref, atol=1e-5, rtol=1e-5)

    print("KERNEL_OK")
</pallas_src>

<mosaic_0001>
module attributes {stable_mosaic.version = 11 : i64} {
  func.func @_dendro_logreg_kernel(%arg0: i32, %arg1: memref<128x1xi32, #tpu.memory_space<vmem>>, %arg2: memref<128x64xf32, #tpu.memory_space<vmem>>, %arg3: memref<64x17xf32, #tpu.memory_space<vmem>>, %arg4: memref<17x12xf32, #tpu.memory_space<vmem>>, %arg5: memref<1x128xf32, #tpu.memory_space<vmem>>) attributes {dimension_semantics = [#tpu.dimension_semantics<parallel>], iteration_bounds = array<i64: 2>, scalar_prefetch = 0 : i64, scratch_operands = 0 : i64, tpu.core_type = #tpu.core_type<tc>, window_params = [{transform_indices = @transform_0, window_bounds = array<i64: 128, 1>}, {transform_indices = @transform_1, window_bounds = array<i64: 128, 64>}, {pipeline_mode = #tpu.pipeline_mode<synchronous>, transform_indices = @transform_2, window_bounds = array<i64: 64, 17>}, {pipeline_mode = #tpu.pipeline_mode<synchronous>, transform_indices = @transform_3, window_bounds = array<i64: 17, 12>}, {transform_indices = @transform_4, window_bounds = array<i64: 1, 128>}]} {
    %c0 = arith.constant 0 : index
    %c0_0 = arith.constant 0 : index
    %0 = vector.load %arg2[%c0, %c0_0] : memref<128x64xf32, #tpu.memory_space<vmem>>, vector<128x64xf32>
    %c0_1 = arith.constant 0 : index
    %c0_2 = arith.constant 0 : index
    %1 = vector.load %arg3[%c0_1, %c0_2] : memref<64x17xf32, #tpu.memory_space<vmem>>, vector<64x17xf32>
    %cst = arith.constant dense<0.000000e+00> : vector<128x17xf32>
    %2 = tpu.matmul %0, %1, %cst {dimension_numbers = #tpu.dot_dimension_numbers<[1], [0], [0], [1], [0, 0, 1, 1], [], []>} : vector<128x64xf32>, vector<64x17xf32>, vector<128x17xf32> -> vector<128x17xf32>
    %c0_3 = arith.constant 0 : index
    %c0_4 = arith.constant 0 : index
    %3 = vector.load %arg4[%c0_3, %c0_4] : memref<17x12xf32, #tpu.memory_space<vmem>>, vector<17x12xf32>
    %cst_5 = arith.constant dense<0.000000e+00> : vector<128x12xf32>
    %4 = tpu.matmul %2, %3, %cst_5 {dimension_numbers = #tpu.dot_dimension_numbers<[1], [0], [0], [1], [0, 0, 1, 1], [], []>} : vector<128x17xf32>, vector<17x12xf32>, vector<128x12xf32> -> vector<128x12xf32>
    %c0_6 = arith.constant 0 : index
    %c0_7 = arith.constant 0 : index
    %5 = vector.load %arg1[%c0_6, %c0_7] : memref<128x1xi32, #tpu.memory_space<vmem>>, vector<128x1xi32>
    %6 = tpu.iota {dimensions = array<i32: 1>} : vector<128x12xi32>
    %7 = vector.broadcast %5 : vector<128x1xi32> to vector<128x12xi32>
    %8 = arith.cmpi eq, %6, %7 : vector<128x12xi32>
    %cst_8 = arith.constant 0.000000e+00 : f32
    %9 = vector.broadcast %cst_8 : f32 to vector<128x12xf32>
    %10 = arith.select %8, %4, %9 : vector<128x12xi1>, vector<128x12xf32>
    %cst_9 = arith.constant dense<0.000000e+00> : vector<128xf32>
    %11 = vector.multi_reduction <add>, %10, %cst_9 [1] : vector<128x12xf32> to vector<128xf32>
    %12 = arith.negf %11 : vector<128xf32>
    %13 = math.exp %12 : vector<128xf32>
    %cst_10 = arith.constant 1.000000e+00 : f32
    %14 = vector.broadcast %cst_10 : f32 to vector<128xf32>
    %15 = arith.addf %14, %13 : vector<128xf32>
    %16 = arith.divf %14, %15 : vector<128xf32>
    %17 = vector.shape_cast %16 : vector<128xf32> to vector<1x128xf32>
    %c0_11 = arith.constant 0 : index
    %c0_12 = arith.constant 0 : index
    %18 = vector.load %arg5[%c0_11, %c0_12] : memref<1x128xf32, #tpu.memory_space<vmem>>, vector<1x128xf32>
    tpu.vector_store %arg5[%c0_11, %c0_12], %17 {strides = array<i32>} : memref<1x128xf32, #tpu.memory_space<vmem>>, vector<1x128xf32>,
    return
  }
  func.func @transform_0(%arg0: i32) -> (i32, i32) {
    %c0_i32 = arith.constant 0 : i32
    %c0_i32_0 = arith.constant 0 : i32
    return %arg0, %c0_i32 : i32, i32
  }
  func.func @transform_1(%arg0: i32) -> (i32, i32) {
    %c0_i32 = arith.constant 0 : i32
    %c0_i32_0 = arith.constant 0 : i32
    return %arg0, %c0_i32 : i32, i32
  }
  func.func @transform_2(%arg0: i32) -> (i32, i32) {
    %c0_i32 = arith.constant 0 : i32
    %c0_i32_0 = arith.constant 0 : i32
    %c0_i32_1 = arith.constant 0 : i32
    return %c0_i32, %c0_i32_0 : i32, i32
  }
  func.func @transform_3(%arg0: i32) -> (i32, i32) {
    %c0_i32 = arith.constant 0 : i32
    %c0_i32_0 = arith.constant 0 : i32
    %c0_i32_1 = arith.constant 0 : i32
    return %c0_i32, %c0_i32_0 : i32, i32
  }
  func.func @transform_4(%arg0: i32) -> (i32, i32) {
    %c0_i32 = arith.constant 0 : i32
    %c0_i32_0 = arith.constant 0 : i32
    return %c0_i32, %arg0 : i32, i32
  }
}

</mosaic_0001>

<llo_original>
// kernel: tpu_custom_call.1
$region0: #{tpu_custom_call.1}
  #allocation0 [shape = 'u32[]', space=smem, size = 0x4, offset = 0x4, fixed_abs, tag = 'smem constant byte address 0x4 - core index']
  #allocation1 [shape = 'u32[144,128]{1,0:T(1,128)}', space=vmem, size = 0x12000, scoped, tag = 'internal scratch']
  %s0 = inlined_call_operand.vmem [shape: s32[256,1], index: 0, kind: input, shape index: {}]
  %s1 = inlined_call_operand.vmem [shape: f32[256,64], index: 1, kind: input, shape index: {}]
  %s2 = inlined_call_operand.vmem [shape: f32[64,17], index: 2, kind: input, shape index: {}]
  %s3 = inlined_call_operand.vmem [shape: f32[17,12], index: 3, kind: input, shape index: {}]
  %s4 = inlined_call_operand.hbm [shape: f32[1,256], index: 4, kind: output, shape index: {}]
  %s5 = sld [smem:[#allocation0]]
  $region49: #{tpu_custom_call.1} parent=0
    _
  %s7 = ssub.s32 1, %s5
  %s8 = scalar_select 0, %s7, %s5
  $region1: #{tpu_custom_call.1} parent=0
    #allocation2 [shape = 'u8[1024]{0}', space=vmem, size = 0x400, scoped, tag = 'output window, operand 0']
    #allocation3 [shape = 's32[2]{0}', space=sflag, size = 0x8, scoped, tag = 'scoped memory for tpu_custom_call.1']
    %9 = vsyncpa [#allocation3], 0
    %s10 = scalar_lea.sflag [#allocation3], 1
    %11 = vsyncpa %s10, 0
    loop: start=0, step=1, limit=4
    $region2: #{tpu_custom_call.1} parent=1 // loop_pre_header
      _
    $region3: #{tpu_custom_call.1} parent=1 // loop_header
      %s13 = sphi 0, %s17
      %p14 = scmp.ge.s32.totalorder %s13, 4
      %s23 = sphi 0, %s25
      %s26 = sphi 0, %s23
      %s27 = sphi 0, %s26
      %s43 = sphi 0, %s27
      %s49 = sphi 0, %s51
      %s52 = sphi 0, %s49
      %s53 = sphi 0, %s52
      %s69 = sphi 0, %s53
      %s73 = sphi 0, %s73
      %s75 = sphi 0, %s73
      %s76 = sphi 0, %s75
      %s90 = sphi 0, %s76
      %s94 = sphi 0, %s94
      %s96 = sphi 0, %s94
      %s97 = sphi 0, %s96
      %s111 = sphi 0, %s97
      %s117 = sphi 0, %s119
      %s120 = sphi 0, %s117
      %s121 = sphi 0, %s120
      %s137 = sphi 0, %s121
    $region4: #{tpu_custom_call.1} parent=1 // loop_header_branch
      %16 = sbr.rel (%p14) target = $region8
    $region5: #{tpu_custom_call.1} parent=1 // loop_body
      %s18 = ssub.s32 %s13, 1
      %s19 = ssub.s32 %s13, 2
      %s20 = sadd.s32 %s13, 1
      %s21 = ssub.s32 %s13, %s20
      %p22 = scmp.eq.s32.totalorder %s21, 0
      %s24 = sadd.s32 %s23, 1
      %s25 = scalar_select %p22, %s23, %s24
      %p28 = pneg %p22
      %p29 = scmp.eq.s32.totalorder %s13, 1
      %p30 = por %p28, %p29
      %p31 = scmp.ne.s32.totalorder %s23, %s26
      %p32 = scmp.eq.s32.totalorder %s13, 0
      %p33 = por %p31, %p32
      %p34 = scmp.ne.s32.totalorder %s23, %s26
      %p35 = scmp.eq.s32.totalorder %s18, 1
      %p36 = por %p34, %p35
      %p37 = scmp.ne.s32.totalorder %s26, %s27
      %p38 = scmp.eq.s32.totalorder %s18, 0
      %p39 = por %p37, %p38
      %p40 = scmp.ne.s32.totalorder %s26, %s27
      %p41 = scmp.eq.s32.totalorder %s19, 1
      %p42 = por %p40, %p41
      %p44 = scmp.ne.s32.totalorder %s27, %s43
      %p45 = scmp.eq.s32.totalorder %s19, 0
      %p46 = por %p44, %p45
      %s47 = ssub.s32 %s13, %s20
      %p48 = scmp.eq.s32.totalorder %s47, 0
      %s50 = sadd.s32 %s49, 1
      %s51 = scalar_select %p48, %s49, %s50
      %p54 = pneg %p48
      %p55 = scmp.eq.s32.totalorder %s13, 1
      %p56 = por %p54, %p55
      %p57 = scmp.ne.s32.totalorder %s49, %s52
      %p58 = scmp.eq.s32.totalorder %s13, 0
      %p59 = por %p57, %p58
      %p60 = scmp.ne.s32.totalorder %s49, %s52
      %p61 = scmp.eq.s32.totalorder %s18, 1
      %p62 = por %p60, %p61
      %p63 = scmp.ne.s32.totalorder %s52, %s53
      %p64 = scmp.eq.s32.totalorder %s18, 0
      %p65 = por %p63, %p64
      %p66 = scmp.ne.s32.totalorder %s52, %s53
      %p67 = scmp.eq.s32.totalorder %s19, 1
      %p68 = por %p66, %p67
      %p70 = scmp.ne.s32.totalorder %s53, %s69
      %p71 = scmp.eq.s32.totalorder %s19, 0
      %p72 = por %p70, %p71
      %s74 = sadd.s32 %s73, 1
      %p77 = scmp.eq.s32.totalorder %s13, 1
      %p78 = scmp.ne.s32.totalorder %s73, %s75
      %p79 = scmp.eq.s32.totalorder %s13, 0
      %p80 = por %p78, %p79
      %p81 = scmp.ne.s32.totalorder %s73, %s75
      %p82 = scmp.eq.s32.totalorder %s18, 1
      %p83 = por %p81, %p82
      %p84 = scmp.ne.s32.totalorder %s75, %s76
      %p85 = scmp.eq.s32.totalorder %s18, 0
      %p86 = por %p84, %p85
      %p87 = scmp.ne.s32.totalorder %s75, %s76
      %p88 = scmp.eq.s32.totalorder %s19, 1
      %p89 = por %p87, %p88
      %p91 = scmp.ne.s32.totalorder %s76, %s90
      %p92 = scmp.eq.s32.totalorder %s19, 0
      %p93 = por %p91, %p92
      %s95 = sadd.s32 %s94, 1
      %p98 = scmp.eq.s32.totalorder %s13, 1
      %p99 = scmp.ne.s32.totalorder %s94, %s96
      %p100 = scmp.eq.s32.totalorder %s13, 0
      %p101 = por %p99, %p100
      %p102 = scmp.ne.s32.totalorder %s94, %s96
      %p103 = scmp.eq.s32.totalorder %s18, 1
      %p104 = por %p102, %p103
      %p105 = scmp.ne.s32.totalorder %s96, %s97
      %p106 = scmp.eq.s32.totalorder %s18, 0
      %p107 = por %p105, %p106
      %p108 = scmp.ne.s32.totalorder %s96, %s97
      %p109 = scmp.eq.s32.totalorder %s19, 1
      %p110 = por %p108, %p109
      %p112 = scmp.ne.s32.totalorder %s97, %s111
      %p113 = scmp.eq.s32.totalorder %s19, 0
      %p114 = por %p112, %p113
      %s115 = ssub.s32 %s13, %s20
      %p116 = scmp.eq.s32.totalorder %s115, 0
      %s118 = sadd.s32 %s117, 1
      %s119 = scalar_select %p116, %s117, %s118
      %p122 = pneg %p116
      %p123 = scmp.eq.s32.totalorder %s13, 1
      %p124 = por %p122, %p123
      %p125 = scmp.ne.s32.totalorder %s117, %s120
      %p126 = scmp.eq.s32.totalorder %s13, 0
      %p127 = por %p125, %p126
      %p128 = scmp.ne.s32.totalorder %s117, %s120
      %p129 = scmp.eq.s32.totalorder %s18, 1
      %p130 = por %p128, %p129
      %p131 = scmp.ne.s32.totalorder %s120, %s121
      %p132 = scmp.eq.s32.totalorder %s18, 0
      %p133 = por %p131, %p132
      %p134 = scmp.ne.s32.totalorder %s120, %s121
      %p135 = scmp.eq.s32.totalorder %s19, 1
      %p136 = por %p134, %p135
      %p138 = scmp.ne.s32.totalorder %s121, %s137
      %p139 = scmp.eq.s32.totalorder %s19, 0
      %p140 = por %p138, %p139
      %p141 = scmp.le.s32.totalorder 1, %s13
      %p142 = scmp.lt.s32.totalorder %s13, 3
      %p143 = pnand %p141, %p142
      %p144 = pneg %p143
      // Predicated region
      $region9: #{tpu_custom_call.1} parent=5 // pred_check
        _
      $region10: #{tpu_custom_call.1} parent=5 // pred_check_branch
        %146 = sbr.rel (%p143) target = $region12
      $region11: #{tpu_custom_call.1} parent=5 // pred_region
        %s147 = ssub.s32 %s13, 1
        // Predicated region
        $region13: #{tpu_custom_call.1} parent=11 // pred_check
          %p148 = pneg %p86
        $region14: #{tpu_custom_call.1} parent=11 // pred_check_branch
          %150 = sbr.rel (%p148) target = $region16
        $region15: #{tpu_custom_call.1} parent=11 // pred_region
          _
        $region16: #{tpu_custom_call.1} parent=11 // pred_fallthru
          _
        // Predicated region
        $region17: #{tpu_custom_call.1} parent=11 // pred_check
          %p151 = pneg %p107
        $region18: #{tpu_custom_call.1} parent=11 // pred_check_branch
          %153 = sbr.rel (%p151) target = $region20
        $region19: #{tpu_custom_call.1} parent=11 // pred_region
          _
        $region20: #{tpu_custom_call.1} parent=11 // pred_fallthru
          _
      $region12: #{tpu_custom_call.1} parent=5 // pred_fallthru
        _
      %p154 = scmp.lt.s32.totalorder %s13, 2
      // Predicated region
      $region21: #{tpu_custom_call.1} parent=5 // pred_check
        %p155 = pneg %p154
      $region22: #{tpu_custom_call.1} parent=5 // pred_check_branch
        %157 = sbr.rel (%p155) target = $region24
      $region23: #{tpu_custom_call.1} parent=5 // pred_region
        // Predicated region
        $region25: #{tpu_custom_call.1} parent=23 // pred_check
          %p158 = pneg %p33
        $region26: #{tpu_custom_call.1} parent=23 // pred_check_branch
          %160 = sbr.rel (%p158) target = $region28
        $region27: #{tpu_custom_call.1} parent=23 // pred_region
          %s161 = smul.u32 16, %s13
          %p162 = scmp.lt.s32.totalorder %s161, 31
          %s163 = scalar_select %p162, %s161, 31
          %s164 = smul.addr %s163, 8
          %s165 = scalar_lea.vmem %s0, %s164
          %s166 = smul.u32 16, %s13
        $region28: #{tpu_custom_call.1} parent=23 // pred_fallthru
          _
        // Predicated region
        $region29: #{tpu_custom_call.1} parent=23 // pred_check
          %p167 = pneg %p59
        $region30: #{tpu_custom_call.1} parent=23 // pred_check_branch
          %169 = sbr.rel (%p167) target = $region32
        $region31: #{tpu_custom_call.1} parent=23 // pred_region
          %s170 = smul.u32 16, %s13
          %p171 = scmp.lt.s32.totalorder %s170, 31
          %s172 = scalar_select %p171, %s170, 31
          %s173 = smul.addr %s172, 8
          %s174 = scalar_lea.vmem %s1, %s173
          %s175 = smul.u32 16, %s13
        $region32: #{tpu_custom_call.1} parent=23 // pred_fallthru
          _
      $region24: #{tpu_custom_call.1} parent=5 // pred_fallthru
        _
      %p176 = scmp.le.s32.totalorder 1, %s13
      %p177 = scmp.lt.s32.totalorder %s13, 3
      %p178 = pnand %p176, %p177
      %p179 = pneg %p178
      // Predicated region
      $region33: #{tpu_custom_call.1} parent=5 // pred_check
        _
      $region34: #{tpu_custom_call.1} parent=5 // pred_check_branch
        %181 = sbr.rel (%p178) target = $region36
      $region35: #{tpu_custom_call.1} parent=5 // pred_region
        %s182 = ssub.s32 %s13, 1
        %s183 = smul.u32 16, %s18
        %p184 = scmp.lt.s32.totalorder %s183, 31
        %s185 = scalar_select %p184, %s183, 31
        %s186 = smul.addr %s185, 8
        %s187 = scalar_lea.vmem %s0, %s186
        %p188 = pneg %p39
        %p189 = pneg %p36
        %s190 = smul.u32 16, %s18
        %p191 = scmp.lt.s32.totalorder %s190, 31
        %s192 = scalar_select %p191, %s190, 31
        %s193 = smul.addr %s192, 8
        %s194 = scalar_lea.vmem %s1, %s193
        %p195 = pneg %p65
        %p196 = pneg %p62
        %p197 = pneg %p86
        %p198 = pneg %p83
        %p199 = pneg %p107
        %p200 = pneg %p104
        %p201 = pneg %p133
        %p202 = pneg %p130
        %s203 = sand.u32 %s120, 1
        %s204 = scalar_lea.sflag [#allocation3], %s203
        %s205 = sand.u32 %s120, 1
        %s206 = scalar_lea.vmem [#allocation2], %s205
        %s207 = smul.u32 16, %s18
        %p208 = scmp.lt.s32.totalorder %s207, 31
        %s209 = scalar_select %p208, %s207, 31
        %s210 = smul.addr %s209, 8
        %s211 = scalar_lea.vmem %s0, %s210
        %s212 = smul.u32 16, %s18
        %s213 = smul.u32 16, %s18
        %p214 = scmp.lt.s32.totalorder %s213, 31
        %s215 = scalar_select %p214, %s213, 31
        %s216 = smul.addr %s215, 8
        %s217 = scalar_lea.vmem %s1, %s216
        %s218 = smul.u32 16, %s18
        %v219 = vld [vmem:[%s217] sm:$0xff]
        %v220 = vld [vmem:[%s217 + $0x8] sm:$0xff]
        %v221 = vld [vmem:[%s217 + $0x10] sm:$0xff]
        %v222 = vld [vmem:[%s217 + $0x18] sm:$0xff]
        %v223 = vld [vmem:[%s217 + $0x20] sm:$0xff]
        %v224 = vld [vmem:[%s217 + $0x28] sm:$0xff]
        %v225 = vld [vmem:[%s217 + $0x30] sm:$0xff]
        %v226 = vld [vmem:[%s217 + $0x38] sm:$0xff]
        %v227 = vld [vmem:[%s217 + $0x40] sm:$0xff]
        %v228 = vld [vmem:[%s217 + $0x48] sm:$0xff]
        %v229 = vld [vmem:[%s217 + $0x50] sm:$0xff]
        %v230 = vld [vmem:[%s217 + $0x58] sm:$0xff]
        %v231 = vld [vmem:[%s217 + $0x60] sm:$0xff]
        %v232 = vld [vmem:[%s217 + $0x68] sm:$0xff]
        %v233 = vld [vmem:[%s217 + $0x70] sm:$0xff]
        %v234 = vld [vmem:[%s217 + $0x78] sm:$0xff]
        %v235 = vld [vmem:[%s2] sm:$0xff]
        %v236 = vld [vmem:[%s2 + $0x8] sm:$0xff]
        %v237 = vld [vmem:[%s2 + $0x10] sm:$0xff]
        %v238 = vld [vmem:[%s2 + $0x18] sm:$0xff]
        %v239 = vld [vmem:[%s2 + $0x20] sm:$0xff]
        %v240 = vld [vmem:[%s2 + $0x28] sm:$0xff]
        %v241 = vld [vmem:[%s2 + $0x30] sm:$0xff]
        %v242 = vld [vmem:[%s2 + $0x38] sm:$0xff]
        %vm243 = vcmask 523264
        %v245 = vsel %vm243, %v219, 0
        %v248 = vsel %vm243, %v220, 0
        %v251 = vsel %vm243, %v221, 0
        %v254 = vsel %vm243, %v222, 0
        %v257 = vsel %vm243, %v223, 0
        %v260 = vsel %vm243, %v224, 0
        %v263 = vsel %vm243, %v225, 0
        %v266 = vsel %vm243, %v226, 0
        %v269 = vsel %vm243, %v227, 0
        %v272 = vsel %vm243, %v228, 0
        %v275 = vsel %vm243, %v229, 0
        %v278 = vsel %vm243, %v230, 0
        %v281 = vsel %vm243, %v231, 0
        %v284 = vsel %vm243, %v232, 0
        %v287 = vsel %vm243, %v233, 0
        %v290 = vsel %vm243, %v234, 0
        %292 = vmatprep.subr.mxu0 0.0
        %293 = vmatpush1.msra.mxu0 %v235
        %294 = vmatprep.subr.mxu0 0.0
        %295 = vmatpush1.msra.mxu0 %v236
        %296 = vmatprep.subr.mxu0 0.0
        %297 = vmatpush1.msra.mxu0 %v237
        %298 = vmatprep.subr.mxu0 0.0
        %299 = vmatpush1.msra.mxu0 %v238
        %300 = vmatprep.subr.mxu0 0.0
        %301 = vmatpush1.msra.mxu0 %v239
        %302 = vmatprep.subr.mxu0 0.0
        %303 = vmatpush1.msra.mxu0 %v240
        %304 = vmatprep.subr.mxu0 0.0
        %305 = vmatpush1.msra.mxu0 %v241
        %306 = vmatprep.subr.mxu0 0.0
        %307 = vmatpush1.msra.mxu0 %v242
        %308 = vmatprep.subr.mxu0 0.0
        %309 = vmatpush1.msra.mxu0 0.0
        %310 = vmatprep.subr.mxu0 0.0
        %311 = vmatpush1.msra.mxu0 0.0
        %312 = vmatprep.subr.mxu0 0.0
        %313 = vmatpush1.msra.mxu0 0.0
        %314 = vmatprep.subr.mxu0 0.0
        %315 = vmatpush1.msra.mxu0 0.0
        %316 = vmatprep.subr.mxu0 0.0
        %317 = vmatpush1.msra.mxu0 0.0
        %318 = vmatprep.subr.mxu0 0.0
        %319 = vmatpush1.msra.mxu0 0.0
        %320 = vmatprep.subr.mxu0 0.0
        %321 = vmatpush1.msra.mxu0 0.0
        %322 = vmatprep.subr.mxu0 0.0
        %323 = vmatpush1.msra.mxu0 0.0
        %324 = vmatprep.subr.mxu0 0.0
        %325 = vmatpush1.msra.mxu0 0.0
        %326 = vmatprep.subr.mxu0 0.0
        %327 = vmatpush1.msra.mxu0 0.0
        %328 = vmatprep.subr.mxu0 0.0
        %329 = vmatpush1.msra.mxu0 0.0
        %330 = vmatprep.subr.mxu0 0.0
        %331 = vmatpush1.msra.mxu0 0.0
        %332 = vmatprep.subr.mxu0 0.0
        %333 = vmatpush1.msra.mxu0 0.0
        %334 = vmatprep.subr.mxu0 0.0
        %335 = vmatpush1.msra.mxu0 0.0
        %336 = vmatprep.subr.mxu0 0.0
        %337 = vmatpush1.msra.mxu0 0.0
        %338 = vmatprep.subr.mxu0 0.0
        %339 = vmatpush1.msra.mxu0 0.0
        %340 = vmatprep.subr.mxu0 0.0
        %341 = vmatpush1.msra.mxu0 0.0
        %342 = vmatprep.subr.mxu0 0.0
        %343 = vmatpush1.msra.mxu0 0.0
        %344 = vmatprep.subr.mxu0 0.0
        %345 = vmatpush1.msra.mxu0 0.0
        %346 = vmatprep.subr.mxu0 0.0
        %347 = vmatpush1.msra.mxu0 0.0
        %348 = vmatprep.subr.mxu0 0.0
        %349 = vmatpush1.msra.mxu0 0.0
        %350 = vmatprep.subr.mxu0 0.0
        %351 = vmatpush1.msra.mxu0 0.0
        %352 = vmatprep.subr.mxu0 0.0
        %353 = vmatpush1.msra.mxu0 0.0
        %354 = vmatprep.subr.mxu0 0.0
        %355 = vmatpush1.msra.mxu0 0.0
        %356 = vmatprep.mubr.f32.mxu0 0.0
        %357 = vmatmul.mubr.f32.gmra.mrb[0].mxu0 %v245
        %v358 = vpop.f32.mrb[0].mxu0
        %v359 = vadd.f32 0.0, %v358
        %v360 = vpop.f32.mrb[0].mxu0
        %361 = vmatprep.mubr.f32.mxu0 0.0
        %362 = vmatmul.mubr.f32.gmra.mrb[0].mxu0 %v248
        %v363 = vpop.f32.mrb[0].mxu0
        %v364 = vadd.f32 0.0, %v363
        %v365 = vpop.f32.mrb[0].mxu0
        %366 = vmatprep.mubr.f32.mxu0 0.0
        %367 = vmatmul.mubr.f32.gmra.mrb[0].mxu0 %v251
        %v368 = vpop.f32.mrb[0].mxu0
        %v369 = vadd.f32 0.0, %v368
        %v370 = vpop.f32.mrb[0].mxu0
        %371 = vmatprep.mubr.f32.mxu0 0.0
        %372 = vmatmul.mubr.f32.gmra.mrb[0].mxu0 %v254
        %v373 = vpop.f32.mrb[0].mxu0
        %v374 = vadd.f32 0.0, %v373
        %v375 = vpop.f32.mrb[0].mxu0
        %376 = vmatprep.mubr.f32.mxu0 0.0
        %377 = vmatmul.mubr.f32.gmra.mrb[0].mxu0 %v257
        %v378 = vpop.f32.mrb[0].mxu0
        %v379 = vadd.f32 0.0, %v378
        %v380 = vpop.f32.mrb[0].mxu0
        %381 = vmatprep.mubr.f32.mxu0 0.0
        %382 = vmatmul.mubr.f32.gmra.mrb[0].mxu0 %v260
        %v383 = vpop.f32.mrb[0].mxu0
        %v384 = vadd.f32 0.0, %v383
        %v385 = vpop.f32.mrb[0].mxu0
        %386 = vmatprep.mubr.f32.mxu0 0.0
        %387 = vmatmul.mubr.f32.gmra.mrb[0].mxu0 %v263
        %v388 = vpop.f32.mrb[0].mxu0
        %v389 = vadd.f32 0.0, %v388
        %v390 = vpop.f32.mrb[0].mxu0
        %391 = vmatprep.mubr.f32.mxu0 0.0
        %392 = vmatmul.mubr.f32.gmra.mrb[0].mxu0 %v266
        %v393 = vpop.f32.mrb[0].mxu0
        %v394 = vadd.f32 0.0, %v393
        %v395 = vpop.f32.mrb[0].mxu0
        %396 = vmatprep.mubr.f32.mxu0 0.0
        %397 = vmatmul.mubr.f32.gmra.mrb[0].mxu0 %v269
        %v398 = vpop.f32.mrb[0].mxu0
        %v399 = vadd.f32 0.0, %v398
        %v400 = vpop.f32.mrb[0].mxu0
        %401 = vmatprep.mubr.f32.mxu0 0.0
        %402 = vmatmul.mubr.f32.gmra.mrb[0].mxu0 %v272
        %v403 = vpop.f32.mrb[0].mxu0
        %v404 = vadd.f32 0.0, %v403
        %v405 = vpop.f32.mrb[0].mxu0
        %406 = vmatprep.mubr.f32.mxu0 0.0
        %407 = vmatmul.mubr.f32.gmra.mrb[0].mxu0 %v275
        %v408 = vpop.f32.mrb[0].mxu0
        %v409 = vadd.f32 0.0, %v408
        %v410 = vpop.f32.mrb[0].mxu0
        %411 = vmatprep.mubr.f32.mxu0 0.0
        %412 = vmatmul.mubr.f32.gmra.mrb[0].mxu0 %v278
        %v413 = vpop.f32.mrb[0].mxu0
        %v414 = vadd.f32 0.0, %v413
        %v415 = vpop.f32.mrb[0].mxu0
        %416 = vmatprep.mubr.f32.mxu0 0.0
        %417 = vmatmul.mubr.f32.gmra.mrb[0].mxu0 %v281
        %v418 = vpop.f32.mrb[0].mxu0
        %v419 = vadd.f32 0.0, %v418
        %v420 = vpop.f32.mrb[0].mxu0
        %421 = vmatprep.mubr.f32.mxu0 0.0
        %422 = vmatmul.mubr.f32.gmra.mrb[0].mxu0 %v284
        %v423 = vpop.f32.mrb[0].mxu0
        %v424 = vadd.f32 0.0, %v423
        %v425 = vpop.f32.mrb[0].mxu0
        %426 = vmatprep.mubr.f32.mxu0 0.0
        %427 = vmatmul.mubr.f32.gmra.mrb[0].mxu0 %v287
        %v428 = vpop.f32.mrb[0].mxu0
        %v429 = vadd.f32 0.0, %v428
        %v430 = vpop.f32.mrb[0].mxu0
        %431 = vmatprep.mubr.f32.mxu0 0.0
        %432 = vmatmul.mubr.f32.gmra.mrb[0].mxu0 %v290
        %v433 = vpop.f32.mrb[0].mxu0
        %v434 = vadd.f32 0.0, %v433
        %v435 = vpop.f32.mrb[0].mxu0
        %436 = vdwg.mxu0
        %v437 = vld [vmem:[%s3] sm:$0xff]
        %v438 = vld [vmem:[%s3 + $0x8] sm:$0xff]
        %v439 = vld [vmem:[%s3 + $0x10] sm:$0x1]
        %vm440 = vcmask 138240
        %v442 = vsel %vm440, %v359, 0
        %v445 = vsel %vm440, %v364, 0
        %v448 = vsel %vm440, %v369, 0
        %v451 = vsel %vm440, %v374, 0
        %v454 = vsel %vm440, %v379, 0
        %v457 = vsel %vm440, %v384, 0
        %v460 = vsel %vm440, %v389, 0
        %v463 = vsel %vm440, %v394, 0
        %v466 = vsel %vm440, %v399, 0
        %v469 = vsel %vm440, %v404, 0
        %v472 = vsel %vm440, %v409, 0
        %v475 = vsel %vm440, %v414, 0
        %v478 = vsel %vm440, %v419, 0
        %v481 = vsel %vm440, %v424, 0
        %v484 = vsel %vm440, %v429, 0
        %v487 = vsel %vm440, %v434, 0
        %vm489 = vcmask 1040384
        %v491 = vsel %vm489, %v439, 0
        %493 = vmatprep.subr.mxu0 0.0
        %494 = vmatpush1.msra.mxu0 %v437
        %495 = vmatprep.subr.mxu0 0.0
        %496 = vmatpush1.msra.mxu0 %v438
        %497 = vmatprep.subr.mxu0 0.0
        %498 = vmatpush1.msra.mxu0 %v491
        %499 = vmatprep.subr.mxu0 0.0
        %500 = vmatpush1.msra.mxu0 0.0
        %501 = vmatprep.subr.mxu0 0.0
        %502 = vmatpush1.msra.mxu0 0.0
        %503 = vmatprep.subr.mxu0 0.0
        %504 = vmatpush1.msra.mxu0 0.0
        %505 = vmatprep.subr.mxu0 0.0
        %506 = vmatpush1.msra.mxu0 0.0
        %507 = vmatprep.subr.mxu0 0.0
        %508 = vmatpush1.msra.mxu0 0.0
        %509 = vmatprep.subr.mxu0 0.0
        %510 = vmatpush1.msra.mxu0 0.0
        %511 = vmatprep.subr.mxu0 0.0
        %512 = vmatpush1.msra.mxu0 0.0
        %513 = vmatprep.subr.mxu0 0.0
        %514 = vmatpush1.msra.mxu0 0.0
        %515 = vmatprep.subr.mxu0 0.0
        %516 = vmatpush1.msra.mxu0 0.0
        %517 = vmatprep.subr.mxu0 0.0
        %518 = vmatpush1.msra.mxu0 0.0
        %519 = vmatprep.subr.mxu0 0.0
        %520 = vmatpush1.msra.mxu0 0.0
        %521 = vmatprep.subr.mxu0 0.0
        %522 = vmatpush1.msra.mxu0 0.0
        %523 = vmatprep.subr.mxu0 0.0
        %524 = vmatpush1.msra.mxu0 0.0
        %525 = vmatprep.subr.mxu0 0.0
        %526 = vmatpush1.msra.mxu0 0.0
        %527 = vmatprep.subr.mxu0 0.0
        %528 = vmatpush1.msra.mxu0 0.0
        %529 = vmatprep.subr.mxu0 0.0
        %530 = vmatpush1.msra.mxu0 0.0
        %531 = vmatprep.subr.mxu0 0.0
        %532 = vmatpush1.msra.mxu0 0.0
        %533 = vmatprep.subr.mxu0 0.0
        %534 = vmatpush1.msra.mxu0 0.0
        %535 = vmatprep.subr.mxu0 0.0
        %536 = vmatpush1.msra.mxu0 0.0
        %537 = vmatprep.subr.mxu0 0.0
        %538 = vmatpush1.msra.mxu0 0.0
        %539 = vmatprep.subr.mxu0 0.0
        %540 = vmatpush1.msra.mxu0 0.0
        %541 = vmatprep.subr.mxu0 0.0
        %542 = vmatpush1.msra.mxu0 0.0
        %543 = vmatprep.subr.mxu0 0.0
        %544 = vmatpush1.msra.mxu0 0.0
        %545 = vmatprep.subr.mxu0 0.0
        %546 = vmatpush1.msra.mxu0 0.0
        %547 = vmatprep.subr.mxu0 0.0
        %548 = vmatpush1.msra.mxu0 0.0
        %549 = vmatprep.subr.mxu0 0.0
        %550 = vmatpush1.msra.mxu0 0.0
        %551 = vmatprep.subr.mxu0 0.0
        %552 = vmatpush1.msra.mxu0 0.0
        %553 = vmatprep.subr.mxu0 0.0
        %554 = vmatpush1.msra.mxu0 0.0
        %555 = vmatprep.subr.mxu0 0.0
        %556 = vmatpush1.msra.mxu0 0.0
        %557 = vmatprep.mubr.f32.mxu0 0.0
        %558 = vmatmul.mubr.f32.gmra.mrb[0].mxu0 %v442
        %v559 = vpop.f32.mrb[0].mxu0
        %v560 = vadd.f32 0.0, %v559
        %v561 = vpop.f32.mrb[0].mxu0
        %562 = vmatprep.mubr.f32.mxu0 0.0
        %563 = vmatmul.mubr.f32.gmra.mrb[0].mxu0 %v445
        %v564 = vpop.f32.mrb[0].mxu0
        %v565 = vadd.f32 0.0, %v564
        %v566 = vpop.f32.mrb[0].mxu0
        %567 = vmatprep.mubr.f32.mxu0 0.0
        %568 = vmatmul.mubr.f32.gmra.mrb[0].mxu0 %v448
        %v569 = vpop.f32.mrb[0].mxu0
        %v570 = vadd.f32 0.0, %v569
        %v571 = vpop.f32.mrb[0].mxu0
        %572 = vmatprep.mubr.f32.mxu0 0.0
        %573 = vmatmul.mubr.f32.gmra.mrb[0].mxu0 %v451
        %v574 = vpop.f32.mrb[0].mxu0
        %v575 = vadd.f32 0.0, %v574
        %v576 = vpop.f32.mrb[0].mxu0
        %577 = vmatprep.mubr.f32.mxu0 0.0
        %578 = vmatmul.mubr.f32.gmra.mrb[0].mxu0 %v454
        %v579 = vpop.f32.mrb[0].mxu0
        %v580 = vadd.f32 0.0, %v579
        %v581 = vpop.f32.mrb[0].mxu0
        %582 = vmatprep.mubr.f32.mxu0 0.0
        %583 = vmatmul.mubr.f32.gmra.mrb[0].mxu0 %v457
        %v584 = vpop.f32.mrb[0].mxu0
        %v585 = vadd.f32 0.0, %v584
        %v586 = vpop.f32.mrb[0].mxu0
        %587 = vmatprep.mubr.f32.mxu0 0.0
        %588 = vmatmul.mubr.f32.gmra.mrb[0].mxu0 %v460
        %v589 = vpop.f32.mrb[0].mxu0
        %v590 = vadd.f32 0.0, %v589
        %v591 = vpop.f32.mrb[0].mxu0
        %592 = vmatprep.mubr.f32.mxu0 0.0
        %593 = vmatmul.mubr.f32.gmra.mrb[0].mxu0 %v463
        %v594 = vpop.f32.mrb[0].mxu0
        %v595 = vadd.f32 0.0, %v594
        %v596 = vpop.f32.mrb[0].mxu0
        %597 = vmatprep.mubr.f32.mxu0 0.0
        %598 = vmatmul.mubr.f32.gmra.mrb[0].mxu0 %v466
        %v599 = vpop.f32.mrb[0].mxu0
        %v600 = vadd.f32 0.0, %v599
        %v601 = vpop.f32.mrb[0].mxu0
        %602 = vmatprep.mubr.f32.mxu0 0.0
        %603 = vmatmul.mubr.f32.gmra.mrb[0].mxu0 %v469
        %v604 = vpop.f32.mrb[0].mxu0
        %v605 = vadd.f32 0.0, %v604
        %v606 = vpop.f32.mrb[0].mxu0
        %607 = vmatprep.mubr.f32.mxu0 0.0
        %608 = vmatmul.mubr.f32.gmra.mrb[0].mxu0 %v472
        %v609 = vpop.f32.mrb[0].mxu0
        %v610 = vadd.f32 0.0, %v609
        %v611 = vpop.f32.mrb[0].mxu0
        %612 = vmatprep.mubr.f32.mxu0 0.0
        %613 = vmatmul.mubr.f32.gmra.mrb[0].mxu0 %v475
        %v614 = vpop.f32.mrb[0].mxu0
        %v615 = vadd.f32 0.0, %v614
        %v616 = vpop.f32.mrb[0].mxu0
        %617 = vmatprep.mubr.f32.mxu0 0.0
        %618 = vmatmul.mubr.f32.gmra.mrb[0].mxu0 %v478
        %v619 = vpop.f32.mrb[0].mxu0
        %v620 = vadd.f32 0.0, %v619
        %v621 = vpop.f32.mrb[0].mxu0
        %622 = vmatprep.mubr.f32.mxu0 0.0
        %623 = vmatmul.mubr.f32.gmra.mrb[0].mxu0 %v481
        %v624 = vpop.f32.mrb[0].mxu0
        %v625 = vadd.f32 0.0, %v624
        %v626 = vpop.f32.mrb[0].mxu0
        %627 = vmatprep.mubr.f32.mxu0 0.0
        %628 = vmatmul.mubr.f32.gmra.mrb[0].mxu0 %v484
        %v629 = vpop.f32.mrb[0].mxu0
        %v630 = vadd.f32 0.0, %v629
        %v631 = vpop.f32.mrb[0].mxu0
        %632 = vmatprep.mubr.f32.mxu0 0.0
        %633 = vmatmul.mubr.f32.gmra.mrb[0].mxu0 %v487
        %v634 = vpop.f32.mrb[0].mxu0
        %v635 = vadd.f32 0.0, %v634
        %v636 = vpop.f32.mrb[0].mxu0
        %637 = vdwg.mxu0
        %v638 = vld [vmem:[%s211] sm:$0xff]
        %v639 = vld [vmem:[%s211 + $0x8] sm:$0xff]
        %v640 = vld [vmem:[%s211 + $0x10] sm:$0xff]
        %v641 = vld [vmem:[%s211 + $0x18] sm:$0xff]
        %v642 = vld [vmem:[%s211 + $0x20] sm:$0xff]
        %v643 = vld [vmem:[%s211 + $0x28] sm:$0xff]
        %v644 = vld [vmem:[%s211 + $0x30] sm:$0xff]
        %v645 = vld [vmem:[%s211 + $0x38] sm:$0xff]
        %v646 = vld [vmem:[%s211 + $0x40] sm:$0xff]
        %v647 = vld [vmem:[%s211 + $0x48] sm:$0xff]
        %v648 = vld [vmem:[%s211 + $0x50] sm:$0xff]
        %v649 = vld [vmem:[%s211 + $0x58] sm:$0xff]
        %v650 = vld [vmem:[%s211 + $0x60] sm:$0xff]
        %v651 = vld [vmem:[%s211 + $0x68] sm:$0xff]
        %v652 = vld [vmem:[%s211 + $0x70] sm:$0xff]
        %v653 = vld [vmem:[%s211 + $0x78] sm:$0xff]
        %v654 = vlaneseq
        %v655 = vand.u32 %v654, 127
        %656 = vset.pattern.permute.xlu0 0
        %657 = vperm.xlu0 %656, %v638
        %v658 = vpop.permute.xlu0 %657
        %659 = vset.pattern.permute.xlu0 0
        %660 = vperm.xlu0 %659, %v639
        %v661 = vpop.permute.xlu0 %660
        %662 = vset.pattern.permute.xlu0 0
        %663 = vperm.xlu0 %662, %v640
        %v664 = vpop.permute.xlu0 %663
        %665 = vset.pattern.permute.xlu0 0
        %666 = vperm.xlu0 %665, %v641
        %v667 = vpop.permute.xlu0 %666
        %668 = vset.pattern.permute.xlu0 0
        %669 = vperm.xlu0 %668, %v642
        %v670 = vpop.permute.xlu0 %669
        %671 = vset.pattern.permute.xlu0 0
        %672 = vperm.xlu0 %671, %v643
        %v673 = vpop.permute.xlu0 %672
        %674 = vset.pattern.permute.xlu0 0
        %675 = vperm.xlu0 %674, %v644
        %v676 = vpop.permute.xlu0 %675
        %677 = vset.pattern.permute.xlu0 0
        %678 = vperm.xlu0 %677, %v645
        %v679 = vpop.permute.xlu0 %678
        %680 = vset.pattern.permute.xlu0 0
        %681 = vperm.xlu0 %680, %v646
        %v682 = vpop.permute.xlu0 %681
        %683 = vset.pattern.permute.xlu0 0
        %684 = vperm.xlu0 %683, %v647
        %v685 = vpop.permute.xlu0 %684
        %686 = vset.pattern.permute.xlu0 0
        %687 = vperm.xlu0 %686, %v648
        %v688 = vpop.permute.xlu0 %687
        %689 = vset.pattern.permute.xlu0 0
        %690 = vperm.xlu0 %689, %v649
        %v691 = vpop.permute.xlu0 %690
        %692 = vset.pattern.permute.xlu0 0
        %693 = vperm.xlu0 %692, %v650
        %v694 = vpop.permute.xlu0 %693
        %695 = vset.pattern.permute.xlu0 0
        %696 = vperm.xlu0 %695, %v651
        %v697 = vpop.permute.xlu0 %696
        %698 = vset.pattern.permute.xlu0 0
        %699 = vperm.xlu0 %698, %v652
        %v700 = vpop.permute.xlu0 %699
        %701 = vset.pattern.permute.xlu0 0
        %702 = vperm.xlu0 %701, %v653
        %v703 = vpop.permute.xlu0 %702
        %vm704 = vcmp.eq.s32.totalorder %v655, %v658
        %vm705 = vcmp.eq.s32.totalorder %v655, %v661
        %vm706 = vcmp.eq.s32.totalorder %v655, %v664
        %vm707 = vcmp.eq.s32.totalorder %v655, %v667
        %vm708 = vcmp.eq.s32.totalorder %v655, %v670
        %vm709 = vcmp.eq.s32.totalorder %v655, %v673
        %vm710 = vcmp.eq.s32.totalorder %v655, %v676
        %vm711 = vcmp.eq.s32.totalorder %v655, %v679
        %vm712 = vcmp.eq.s32.totalorder %v655, %v682
        %vm713 = vcmp.eq.s32.totalorder %v655, %v685
        %vm714 = vcmp.eq.s32.totalorder %v655, %v688
        %vm715 = vcmp.eq.s32.totalorder %v655, %v691
        %vm716 = vcmp.eq.s32.totalorder %v655, %v694
        %vm717 = vcmp.eq.s32.totalorder %v655, %v697
        %vm718 = vcmp.eq.s32.totalorder %v655, %v700
        %vm719 = vcmp.eq.s32.totalorder %v655, %v703
        %v720 = vsel %vm704, %v560, 0.0
        %v721 = vsel %vm705, %v565, 0.0
        %v722 = vsel %vm706, %v570, 0.0
        %v723 = vsel %vm707, %v575, 0.0
        %v724 = vsel %vm708, %v580, 0.0
        %v725 = vsel %vm709, %v585, 0.0
        %v726 = vsel %vm710, %v590, 0.0
        %v727 = vsel %vm711, %v595, 0.0
        %v728 = vsel %vm712, %v600, 0.0
        %v729 = vsel %vm713, %v605, 0.0
        %v730 = vsel %vm714, %v610, 0.0
        %v731 = vsel %vm715, %v615, 0.0
        %v732 = vsel %vm716, %v620, 0.0
        %v733 = vsel %vm717, %v625, 0.0
        %v734 = vsel %vm718, %v630, 0.0
        %v735 = vsel %vm719, %v635, 0.0
        %vm736 = vcmask 97280
        %v737 = vsel %vm736, %v720, 0.0
        %738 = vadd.xlane.f32.xlu0 %v737
        %v739 = vpop.xlane.xlu0 %738
        %v740 = vsel %vm736, %v721, 0.0
        %741 = vadd.xlane.f32.xlu0 %v740
        %v742 = vpop.xlane.xlu0 %741
        %v743 = vsel %vm736, %v722, 0.0
        %744 = vadd.xlane.f32.xlu0 %v743
        %v745 = vpop.xlane.xlu0 %744
        %v746 = vsel %vm736, %v723, 0.0
        %747 = vadd.xlane.f32.xlu0 %v746
        %v748 = vpop.xlane.xlu0 %747
        %v749 = vsel %vm736, %v724, 0.0
        %750 = vadd.xlane.f32.xlu0 %v749
        %v751 = vpop.xlane.xlu0 %750
        %v752 = vsel %vm736, %v725, 0.0
        %753 = vadd.xlane.f32.xlu0 %v752
        %v754 = vpop.xlane.xlu0 %753
        %v755 = vsel %vm736, %v726, 0.0
        %756 = vadd.xlane.f32.xlu0 %v755
        %v757 = vpop.xlane.xlu0 %756
        %v758 = vsel %vm736, %v727, 0.0
        %759 = vadd.xlane.f32.xlu0 %v758
        %v760 = vpop.xlane.xlu0 %759
        %v761 = vsel %vm736, %v728, 0.0
        %762 = vadd.xlane.f32.xlu0 %v761
        %v763 = vpop.xlane.xlu0 %762
        %v764 = vsel %vm736, %v729, 0.0
        %765 = vadd.xlane.f32.xlu0 %v764
        %v766 = vpop.xlane.xlu0 %765
        %v767 = vsel %vm736, %v730, 0.0
        %768 = vadd.xlane.f32.xlu0 %v767
        %v769 = vpop.xlane.xlu0 %768
        %v770 = vsel %vm736, %v731, 0.0
        %771 = vadd.xlane.f32.xlu0 %v770
        %v772 = vpop.xlane.xlu0 %771
        %v773 = vsel %vm736, %v732, 0.0
        %774 = vadd.xlane.f32.xlu0 %v773
        %v775 = vpop.xlane.xlu0 %774
        %v776 = vsel %vm736, %v733, 0.0
        %777 = vadd.xlane.f32.xlu0 %v776
        %v778 = vpop.xlane.xlu0 %777
        %v779 = vsel %vm736, %v734, 0.0
        %780 = vadd.xlane.f32.xlu0 %v779
        %v781 = vpop.xlane.xlu0 %780
        %v782 = vsel %vm736, %v735, 0.0
        %783 = vadd.xlane.f32.xlu0 %v782
        %v784 = vpop.xlane.xlu0 %783
        %v785 = vxor.u32 %v739, 2147483648
        %v786 = vxor.u32 %v742, 2147483648
        %v787 = vxor.u32 %v745, 2147483648
        %v788 = vxor.u32 %v748, 2147483648
        %v789 = vxor.u32 %v751, 2147483648
        %v790 = vxor.u32 %v754, 2147483648
        %v791 = vxor.u32 %v757, 2147483648
        %v792 = vxor.u32 %v760, 2147483648
        %v793 = vxor.u32 %v763, 2147483648
        %v794 = vxor.u32 %v766, 2147483648
        %v795 = vxor.u32 %v769, 2147483648
        %v796 = vxor.u32 %v772, 2147483648
        %v797 = vxor.u32 %v775, 2147483648
        %v798 = vxor.u32 %v778, 2147483648
        %v799 = vxor.u32 %v781, 2147483648
        %v800 = vxor.u32 %v784, 2147483648
        %v801 = vmul.f32 %v785, 1.442695
        %v802 = vpow.pop %v801
        %v803 = vmul.f32 %v786, 1.442695
        %v804 = vpow.pop %v803
        %v805 = vmul.f32 %v787, 1.442695
        %v806 = vpow.pop %v805
        %v807 = vmul.f32 %v788, 1.442695
        %v808 = vpow.pop %v807
        %v809 = vmul.f32 %v789, 1.442695
        %v810 = vpow.pop %v809
        %v811 = vmul.f32 %v790, 1.442695
        %v812 = vpow.pop %v811
        %v813 = vmul.f32 %v791, 1.442695
        %v814 = vpow.pop %v813
        %v815 = vmul.f32 %v792, 1.442695
        %v816 = vpow.pop %v815
        %v817 = vmul.f32 %v793, 1.442695
        %v818 = vpow.pop %v817
        %v819 = vmul.f32 %v794, 1.442695
        %v820 = vpow.pop %v819
        %v821 = vmul.f32 %v795, 1.442695
        %v822 = vpow.pop %v821
        %v823 = vmul.f32 %v796, 1.442695
        %v824 = vpow.pop %v823
        %v825 = vmul.f32 %v797, 1.442695
        %v826 = vpow.pop %v825
        %v827 = vmul.f32 %v798, 1.442695
        %v828 = vpow.pop %v827
        %v829 = vmul.f32 %v799, 1.442695
        %v830 = vpow.pop %v829
        %v831 = vmul.f32 %v800, 1.442695
        %v832 = vpow.pop %v831
        %v833 = vadd.f32 %v802, 1.0
        %v834 = vadd.f32 %v804, 1.0
        %v835 = vadd.f32 %v806, 1.0
        %v836 = vadd.f32 %v808, 1.0
        %v837 = vadd.f32 %v810, 1.0
        %v838 = vadd.f32 %v812, 1.0
        %v839 = vadd.f32 %v814, 1.0
        %v840 = vadd.f32 %v816, 1.0
        %v841 = vadd.f32 %v818, 1.0
        %v842 = vadd.f32 %v820, 1.0
        %v843 = vadd.f32 %v822, 1.0
        %v844 = vadd.f32 %v824, 1.0
        %v845 = vadd.f32 %v826, 1.0
        %v846 = vadd.f32 %v828, 1.0
        %v847 = vadd.f32 %v830, 1.0
        %v848 = vadd.f32 %v832, 1.0
        %v849 = vrcp.pop %v833
        %v850 = vmul.f32 1.0, %v849
        %v851 = vrcp.pop %v834
        %v852 = vmul.f32 1.0, %v851
        %v853 = vrcp.pop %v835
        %v854 = vmul.f32 1.0, %v853
        %v855 = vrcp.pop %v836
        %v856 = vmul.f32 1.0, %v855
        %v857 = vrcp.pop %v837
        %v858 = vmul.f32 1.0, %v857
        %v859 = vrcp.pop %v838
        %v860 = vmul.f32 1.0, %v859
        %v861 = vrcp.pop %v839
        %v862 = vmul.f32 1.0, %v861
        %v863 = vrcp.pop %v840
        %v864 = vmul.f32 1.0, %v863
        %v865 = vrcp.pop %v841
        %v866 = vmul.f32 1.0, %v865
        %v867 = vrcp.pop %v842
        %v868 = vmul.f32 1.0, %v867
        %v869 = vrcp.pop %v843
        %v870 = vmul.f32 1.0, %v869
        %v871 = vrcp.pop %v844
        %v872 = vmul.f32 1.0, %v871
        %v873 = vrcp.pop %v845
        %v874 = vmul.f32 1.0, %v873
        %v875 = vrcp.pop %v846
        %v876 = vmul.f32 1.0, %v875
        %v877 = vrcp.pop %v847
        %v878 = vmul.f32 1.0, %v877
        %v879 = vrcp.pop %v848
        %v880 = vmul.f32 1.0, %v879
        %v897 = vlaneseq
        %v898 = vshrl.u32 %v897, 7
        %v899 = vsub.s32 %v655, %v898
        %v900 = vrot.slane %v850, %v899
        %v901 = vadd.s32 %v655, 4294967288
        %v902 = vlaneseq
        %v903 = vshrl.u32 %v902, 7
        %v904 = vsub.s32 %v901, %v903
        %v905 = vrot.slane %v852, %v904
        %vm906 = vcmask 130112
        %v907 = vsel %vm906, %v905, %v900
        %v908 = vadd.s32 %v655, 4294967280
        %v909 = vlaneseq
        %v910 = vshrl.u32 %v909, 7
        %v911 = vsub.s32 %v908, %v910
        %v912 = vrot.slane %v854, %v911
        %vm913 = vcmask 195712
        %v914 = vsel %vm913, %v912, %v907
        %v915 = vadd.s32 %v655, 4294967272
        %v916 = vlaneseq
        %v917 = vshrl.u32 %v916, 7
        %v918 = vsub.s32 %v915, %v917
        %v919 = vrot.slane %v856, %v918
        %vm920 = vcmask 261312
        %v921 = vsel %vm920, %v919, %v914
        %v922 = vadd.s32 %v655, 4294967264
        %v923 = vlaneseq
        %v924 = vshrl.u32 %v923, 7
        %v925 = vsub.s32 %v922, %v924
        %v926 = vrot.slane %v858, %v925
        %vm927 = vcmask 326912
        %v928 = vsel %vm927, %v926, %v921
        %v929 = vadd.s32 %v655, 4294967256
        %v930 = vlaneseq
        %v931 = vshrl.u32 %v930, 7
        %v932 = vsub.s32 %v929, %v931
        %v933 = vrot.slane %v860, %v932
        %vm934 = vcmask 392512
        %v935 = vsel %vm934, %v933, %v928
        %v936 = vadd.s32 %v655, 4294967248
        %v937 = vlaneseq
        %v938 = vshrl.u32 %v937, 7
        %v939 = vsub.s32 %v936, %v938
        %v940 = vrot.slane %v862, %v939
        %vm941 = vcmask 458112
        %v942 = vsel %vm941, %v940, %v935
        %v943 = vadd.s32 %v655, 4294967240
        %v944 = vlaneseq
        %v945 = vshrl.u32 %v944, 7
        %v946 = vsub.s32 %v943, %v945
        %v947 = vrot.slane %v864, %v946
        %vm948 = vcmask 523712
        %v949 = vsel %vm948, %v947, %v942
        %v950 = vadd.s32 %v655, 4294967232
        %v951 = vlaneseq
        %v952 = vshrl.u32 %v951, 7
        %v953 = vsub.s32 %v950, %v952
        %v954 = vrot.slane %v866, %v953
        %vm955 = vcmask 589312
        %v956 = vsel %vm955, %v954, %v949
        %v957 = vadd.s32 %v655, 4294967224
        %v958 = vlaneseq
        %v959 = vshrl.u32 %v958, 7
        %v960 = vsub.s32 %v957, %v959
        %v961 = vrot.slane %v868, %v960
        %vm962 = vcmask 654912
        %v963 = vsel %vm962, %v961, %v956
        %v964 = vadd.s32 %v655, 4294967216
        %v965 = vlaneseq
        %v966 = vshrl.u32 %v965, 7
        %v967 = vsub.s32 %v964, %v966
        %v968 = vrot.slane %v870, %v967
        %vm969 = vcmask 720512
        %v970 = vsel %vm969, %v968, %v963
        %v971 = vadd.s32 %v655, 4294967208
        %v972 = vlaneseq
        %v973 = vshrl.u32 %v972, 7
        %v974 = vsub.s32 %v971, %v973
        %v975 = vrot.slane %v872, %v974
        %vm976 = vcmask 786112
        %v977 = vsel %vm976, %v975, %v970
        %v978 = vadd.s32 %v655, 4294967200
        %v979 = vlaneseq
        %v980 = vshrl.u32 %v979, 7
        %v981 = vsub.s32 %v978, %v980
        %v982 = vrot.slane %v874, %v981
        %vm983 = vcmask 851712
        %v984 = vsel %vm983, %v982, %v977
        %v985 = vadd.s32 %v655, 4294967192
        %v986 = vlaneseq
        %v987 = vshrl.u32 %v986, 7
        %v988 = vsub.s32 %v985, %v987
        %v989 = vrot.slane %v876, %v988
        %vm990 = vcmask 917312
        %v991 = vsel %vm990, %v989, %v984
        %v992 = vadd.s32 %v655, 4294967184
        %v993 = vlaneseq
        %v994 = vshrl.u32 %v993, 7
        %v995 = vsub.s32 %v992, %v994
        %v996 = vrot.slane %v878, %v995
        %vm997 = vcmask 982912
        %v998 = vsel %vm997, %v996, %v991
        %v999 = vadd.s32 %v655, 4294967176
        %v1000 = vlaneseq
        %v1001 = vshrl.u32 %v1000, 7
        %v1002 = vsub.s32 %v999, %v1001
        %v1003 = vrot.slane %v880, %v1002
        %vm1004 = vcmask 1048512
        %v1005 = vsel %vm1004, %v1003, %v998
        %1007 = vst [vmem:[%s206] sm:$0x1] %v1005
        %s1008 = sand.u32 %s120, 1
        %s1009 = scalar_lea.sflag [#allocation3], %s1008
        %s1010 = sand.u32 %s120, 1
        %s1011 = scalar_lea.vmem [#allocation2], %s1010
        // Predicated region
        $region37: #{tpu_custom_call.1} parent=35 // pred_check
          %p1012 = pneg %p130
        $region38: #{tpu_custom_call.1} parent=35 // pred_check_branch
          %1014 = sbr.rel (%p1012) target = $region40
        $region39: #{tpu_custom_call.1} parent=35 // pred_region
          %s1016 = ssub.s32 16, 16
          %1017 = vsyncadd %s1009, %s1016
          %s1018 = smul.addr %s18, 16
          %s1019 = scalar_lea.hbm %s4, %s1018
          %s1021 = sshll.u32 %s1011, 4
          %s1022 = int_to_ptr.vmem [resolvable:$true] %s1021
          %1024 = dma.vmem_to_hbm [thread:$0]  %s1022, 16, %s1019, %s1009
        $region40: #{tpu_custom_call.1} parent=35 // pred_fallthru
          _
      $region36: #{tpu_custom_call.1} parent=5 // pred_fallthru
        _
      %p1025 = scmp.le.s32.totalorder 2, %s13
      // Predicated region
      $region41: #{tpu_custom_call.1} parent=5 // pred_check
        %p1026 = pneg %p1025
      $region42: #{tpu_custom_call.1} parent=5 // pred_check_branch
        %1028 = sbr.rel (%p1026) target = $region44
      $region43: #{tpu_custom_call.1} parent=5 // pred_region
        %s1029 = ssub.s32 %s13, 2
        // Predicated region
        $region45: #{tpu_custom_call.1} parent=43 // pred_check
          %p1030 = pneg %p136
        $region46: #{tpu_custom_call.1} parent=43 // pred_check_branch
          %1032 = sbr.rel (%p1030) target = $region48
        $region47: #{tpu_custom_call.1} parent=43 // pred_region
          %s1033 = sand.u32 %s121, 1
          %s1034 = scalar_lea.sflag [#allocation3], %s1033
          %s1035 = sand.u32 %s121, 1
          %s1036 = scalar_lea.vmem [#allocation2], %s1035
          %1037 = dma.done %s1034, 16
        $region48: #{tpu_custom_call.1} parent=43 // pred_fallthru
          _
      $region44: #{tpu_custom_call.1} parent=5 // pred_fallthru
        _
    $region6: #{tpu_custom_call.1} parent=1 // loop_footer
      %s17 = sadd.s32 1, %s13
    $region7: #{tpu_custom_call.1} parent=1 // loop_footer_branch
      %12 = sbr.rel target = $region3
    $region8: #{tpu_custom_call.1} parent=1 // loop_exit
      _
    %1038 = vsyncpa [#allocation3], 1
    %s1039 = scalar_lea.sflag [#allocation3], 1
    %1040 = vsyncpa %s1039, 1

</llo_original>
